<compile_context>
chip_gen: v7x
topology: tpu7x:2x2x1
jax: 0.10.0
libtpu: 0.0.40
codegen_flags: <defaults>
</compile_context>

<pallas_src>
import math

import jax
import jax.numpy as jnp
from jax.experimental import pallas as pl
from jax.experimental.pallas import tpu as pltpu


def _fused_mlp_kernel(x_ref, w_ref, o_ref, sum_ref, sumsq_ref):
    """One grid step = one (batch_tile, layer) pair.

    x_ref:     (TM, N)  input batch tile (VMEM, f32)
    w_ref:     (N, N)   this layer's weight, already (in, out) layout (VMEM, bf16)
    o_ref:     (TM, N)  resident activation / final output tile (VMEM, f32)
    sum_ref:   (1, L)   this batch tile's per-layer activation sums (SMEM)
    sumsq_ref: (1, L)   this batch tile's per-layer sums of squares (SMEM)
    """
    l = pl.program_id(1)

    @pl.when(l == 0)
    def _():
        # Seed the resident accumulator with the input tile (same f32 dtype).
        o_ref[...] = x_ref[...]

    # y = act @ W  (W is pre-transposed to (in, out), so this equals torch's x @ W.T).
    act_in = o_ref[...].astype(w_ref.dtype)          # bf16 operand for the MXU
    y = jnp.dot(act_in, w_ref[...], preferred_element_type=jnp.float32)
    act = jnp.maximum(y, 0.0)
    o_ref[...] = act                                  # stays resident across layers

    # Partial statistics for the per-layer std; combined on host after the call
    # (a single readback covers every layer).
    sum_ref[0, l] = jnp.sum(act)
    sumsq_ref[0, l] = jnp.sum(act * act)


_VMEM_BUDGET = 48 * 1024 * 1024  # conservative; fits v7x's 64 MiB physical VMEM


def _choose_tm(B, N, w_block_bytes):
    """Largest batch tile whose per-step VMEM working set fits the budget."""

    def step_bytes(tm):
        x_bytes = 2 * tm * N * 4   # input tile, double-buffered
        o_bytes = 2 * tm * N * 4   # resident output/activation tile
        return x_bytes + o_bytes + w_block_bytes

    if step_bytes(B) <= _VMEM_BUDGET:
        return B                   # whole batch resident: weights stream exactly once
    best = None
    t = 8
    while t <= B:
        if B % t == 0 and step_bytes(t) <= _VMEM_BUDGET:
            best = t
        t += 8
    if best is None:
        raise ValueError("No batch tile fits the VMEM budget; reduce N or B.")
    return best


@jax.jit
def mlp_forward(x, w_stacked):
    """Whole MLP forward in one fused Pallas kernel.

    x:         (B, N) f32
    w_stacked: (L, N, N) bf16, each slice is W_i.T ((in, out) layout)
    Returns (out (B, N) f32, per-layer std (L,) f32).
    """
    B, N = x.shape
    L = w_stacked.shape[0]
    assert w_stacked.shape == (L, N, N)
    assert x.dtype == jnp.float32
    assert N % 128 == 0, "feature dim must be lane-aligned (multiple of 128)"

    w_bytes = jnp.dtype(w_stacked.dtype).itemsize
    w_block_bytes = 2 * N * N * w_bytes   # one (N, N) weight block, double-buffered
    # TODO(synk): for very large N (>= ~3500 in bf16) add an out-feature tiling
    # axis instead of an untiled (N, N) weight block (needed under v7x's 64 MiB VMEM).
    assert w_block_bytes <= _VMEM_BUDGET, "N too large for an untiled weight block"

    tm = _choose_tm(B, N, w_block_bytes)
    num_bt = B // tm
    grid = (num_bt, L)  # layer axis last -> innermost (sequential) loop

    flops = 2 * B * N * N * L
    bytes_accessed = (
        num_bt * L * N * N * w_bytes      # weights are re-streamed once per batch tile
        + 2 * B * N * 4                   # x in + final activation out
        + 2 * num_bt * L * 4              # stats
    )

    needed_vmem = w_block_bytes + 4 * tm * N * 4 + (1 << 20)
    vmem_limit = int(min(max(needed_vmem, 32 * 1024 * 1024), 100 * 1024 * 1024))

    out, sums, sumsqs = pl.pallas_call(
        _fused_mlp_kernel,
        out_shape=(
            jax.ShapeDtypeStruct((B, N), x.dtype),
            jax.ShapeDtypeStruct((num_bt, L), jnp.float32),
            jax.ShapeDtypeStruct((num_bt, L), jnp.float32),
        ),
        grid_spec=pltpu.PrefetchScalarGridSpec(
            num_scalar_prefetch=0,
            grid=grid,
            in_specs=[
                pl.BlockSpec((tm, N), lambda bt, l: (bt, 0)),
                pl.BlockSpec((None, N, N), lambda bt, l: (l, 0, 0)),
            ],
            out_specs=(
                # Resident across the layer axis -> doubles as the activation buffer.
                pl.BlockSpec((tm, N), lambda bt, l: (bt, 0)),
                # Per-batch-tile stats blocks (SMEM) so the batch axis can be parallel.
                pl.BlockSpec((1, L), lambda bt, l: (bt, 0),
                             memory_space=pltpu.MemorySpace.SMEM),
                pl.BlockSpec((1, L), lambda bt, l: (bt, 0),
                             memory_space=pltpu.MemorySpace.SMEM),
            ),
        ),
        compiler_params=pltpu.CompilerParams(
            # Batch tiles are independent (megacore-shardable on v7x); the layer
            # axis must stay sequential (resident activation block).
            dimension_semantics=("parallel", "arbitrary"),
            vmem_limit_bytes=vmem_limit,
        ),
        cost_estimate=pl.CostEstimate(
            flops=flops, transcendentals=0, bytes_accessed=bytes_accessed
        ),
    )(x, w_stacked)

    # Combine partial stats -> per-layer std with ddof=1 (matches torch .std()).
    n = B * N
    total_sum = jnp.sum(sums, axis=0)    # (L,)
    total_ss = jnp.sum(sumsqs, axis=0)   # (L,)
    mean = total_sum / n
    # Single-pass variance; adequate at these sizes. NaN / inf still propagate.
    var = (total_ss - n * mean * mean) / (n - 1)
    layer_std = jnp.sqrt(jnp.maximum(var, 0.0))
    return out, layer_std


class MLP:
    """JAX/Pallas port of the PyTorch MLP (bias-free Linear + ReLU stack)."""

    def __init__(self, neural_num, layers, key):
        self.neural_num = neural_num
        self.layers = layers
        # kaiming_normal_ (fan_in mode, relu gain): std = sqrt(2 / fan_in)
        std = math.sqrt(2.0 / neural_num)
        keys = jax.random.split(key, layers)
        ws = [
            std * jax.random.normal(k, (neural_num, neural_num), dtype=jnp.float32)
            for k in keys
        ]
        # Pre-transpose once (torch Linear computes x @ W.T, so store W.T) and
        # keep weights in bf16: halves weight HBM traffic and runs the MXU at
        # native bf16 rate; activations / accumulation remain f32.
        self.w_stacked = jnp.stack([w.T for w in ws], axis=0).astype(jnp.bfloat16)

    def forward(self, x):
        out, layer_std = mlp_forward(x, self.w_stacked)
        layer_std = jax.device_get(layer_std)  # one readback for all layers
        for i in range(self.layers):
            s = float(layer_std[i])
            print("layer:{}, std:{}".format(i, s))
            if math.isnan(s):
                # TODO(synk): the fused kernel always runs all layers; the torch
                # module stops at the first NaN layer (NaN propagates through the
                # remaining matmul/ReLU, so the returned tensor is NaN either way).
                print("output is nan in {} layers".format(i))
                break
        return out


if __name__ == "__main__":
    key = jax.random.PRNGKey(0)
    k_w, k_x = jax.random.split(key)

    neural_num = 128   # feature dim (lane-aligned)
    layers = 5
    batch = 8          # small demo batch; whole batch stays resident in VMEM

    model = MLP(neural_num, layers, k_w)
    x = jax.random.normal(k_x, (batch, neural_num), dtype=jnp.float32)

    out = model.forward(x)
    jax.block_until_ready(out)
    print("KERNEL_OK")
</pallas_src>

<mosaic_0001>
module attributes {stable_mosaic.version = 11 : i64} {
  func.func @_fused_mlp_kernel(%arg0: i32, %arg1: i32, %arg2: memref<8x128xf32, #tpu.memory_space<vmem>>, %arg3: memref<1x128x128xbf16, #tpu.memory_space<vmem>>, %arg4: memref<8x128xf32, #tpu.memory_space<vmem>>, %arg5: memref<1x5xf32, #tpu.memory_space<smem>>, %arg6: memref<1x5xf32, #tpu.memory_space<smem>>) attributes {dimension_semantics = [#tpu.dimension_semantics<parallel>, #tpu.dimension_semantics<arbitrary>], iteration_bounds = array<i64: 1, 5>, scalar_prefetch = 0 : i64, scratch_operands = 0 : i64, tpu.core_type = #tpu.core_type<tc>, window_params = [{transform_indices = @transform_0, window_bounds = array<i64: 8, 128>}, {transform_indices = @transform_1, window_bounds = array<i64: 1, 128, 128>}, {transform_indices = @transform_2, window_bounds = array<i64: 8, 128>}, {transform_indices = @transform_3, window_bounds = array<i64: 1, 5>}, {transform_indices = @transform_4, window_bounds = array<i64: 1, 5>}]} {
    %c0_i32 = arith.constant 0 : i32
    %0 = arith.cmpi eq, %arg1, %c0_i32 : i32
    %1 = arith.extui %0 : i1 to i32
    %c0_i32_0 = arith.constant 0 : i32
    %2 = arith.cmpi ne, %1, %c0_i32_0 : i32
    scf.if %2 {
      %c0_12 = arith.constant 0 : index
      %c0_13 = arith.constant 0 : index
      %24 = vector.load %arg2[%c0_12, %c0_13] : memref<8x128xf32, #tpu.memory_space<vmem>>, vector<8x128xf32>
      %c0_14 = arith.constant 0 : index
      %c0_15 = arith.constant 0 : index
      %25 = vector.load %arg4[%c0_14, %c0_15] : memref<8x128xf32, #tpu.memory_space<vmem>>, vector<8x128xf32>
      tpu.vector_store %arg4[%c0_14, %c0_15], %24 {strides = array<i32>} : memref<8x128xf32, #tpu.memory_space<vmem>>, vector<8x128xf32>,
    } else {
    }
    %c0 = arith.constant 0 : index
    %c0_1 = arith.constant 0 : index
    %3 = vector.load %arg4[%c0, %c0_1] : memref<8x128xf32, #tpu.memory_space<vmem>>, vector<8x128xf32>
    %4 = arith.truncf %3 : vector<8x128xf32> to vector<8x128xbf16>
    %c0_2 = arith.constant 0 : index
    %c0_3 = arith.constant 0 : index
    %c0_4 = arith.constant 0 : index
    %5 = vector.load %arg3[%c0_2, %c0_3, %c0_4] : memref<1x128x128xbf16, #tpu.memory_space<vmem>>, vector<1x128x128xbf16>
    %6 = vector.shape_cast %5 : vector<1x128x128xbf16> to vector<128x128xbf16>
    %cst = arith.constant dense<0.000000e+00> : vector<8x128xf32>
    %7 = tpu.matmul %4, %6, %cst {dimension_numbers = #tpu.dot_dimension_numbers<[1], [0], [0], [1], [0, 0, 1, 1], [], []>} : vector<8x128xbf16>, vector<128x128xbf16>, vector<8x128xf32> -> vector<8x128xf32>
    %cst_5 = arith.constant 0.000000e+00 : f32
    %8 = vector.broadcast %cst_5 : f32 to vector<8x128xf32>
    %9 = arith.maximumf %7, %8 : vector<8x128xf32>
    %c0_6 = arith.constant 0 : index
    %c0_7 = arith.constant 0 : index
    %10 = vector.load %arg4[%c0_6, %c0_7] : memref<8x128xf32, #tpu.memory_space<vmem>>, vector<8x128xf32>
    tpu.vector_store %arg4[%c0_6, %c0_7], %9 {strides = array<i32>} : memref<8x128xf32, #tpu.memory_space<vmem>>, vector<8x128xf32>,
    %11 = vector.shape_cast %9 : vector<8x128xf32> to vector<1x8x128xf32>
    %cst_8 = arith.constant dense<0.000000e+00> : vector<1xf32>
    %12 = vector.multi_reduction <add>, %11, %cst_8 [1, 2] : vector<1x8x128xf32> to vector<1xf32>
    %13 = vector.shape_cast %12 : vector<1xf32> to vector<1x1x1xf32>
    %14 = vector.extract %13[0, 0, 0] : f32 from vector<1x1x1xf32>
    %c0_9 = arith.constant 0 : index
    %15 = arith.index_cast %arg1 : i32 to index
    %16 = memref.load %arg5[%c0_9, %15] : memref<1x5xf32, #tpu.memory_space<smem>>
    memref.store %14, %arg5[%c0_9, %15] : memref<1x5xf32, #tpu.memory_space<smem>>
    %17 = arith.mulf %9, %9 : vector<8x128xf32>
    %18 = vector.shape_cast %17 : vector<8x128xf32> to vector<1x8x128xf32>
    %cst_10 = arith.constant dense<0.000000e+00> : vector<1xf32>
    %19 = vector.multi_reduction <add>, %18, %cst_10 [1, 2] : vector<1x8x128xf32> to vector<1xf32>
    %20 = vector.shape_cast %19 : vector<1xf32> to vector<1x1x1xf32>
    %21 = vector.extract %20[0, 0, 0] : f32 from vector<1x1x1xf32>
    %c0_11 = arith.constant 0 : index
    %22 = arith.index_cast %arg1 : i32 to index
    %23 = memref.load %arg6[%c0_11, %22] : memref<1x5xf32, #tpu.memory_space<smem>>
    memref.store %21, %arg6[%c0_11, %22] : memref<1x5xf32, #tpu.memory_space<smem>>
    return
  }
  func.func @transform_0(%arg0: i32, %arg1: i32) -> (i32, i32) {
    %c0_i32 = arith.constant 0 : i32
    %c0_i32_0 = arith.constant 0 : i32
    return %arg0, %c0_i32 : i32, i32
  }
  func.func @transform_1(%arg0: i32, %arg1: i32) -> (i32, i32, i32) {
    %c0_i32 = arith.constant 0 : i32
    %c0_i32_0 = arith.constant 0 : i32
    %c0_i32_1 = arith.constant 0 : i32
    return %arg1, %c0_i32, %c0_i32_0 : i32, i32, i32
  }
  func.func @transform_2(%arg0: i32, %arg1: i32) -> (i32, i32) {
    %c0_i32 = arith.constant 0 : i32
    %c0_i32_0 = arith.constant 0 : i32
    return %arg0, %c0_i32 : i32, i32
  }
  func.func @transform_3(%arg0: i32, %arg1: i32) -> (i32, i32) {
    %c0_i32 = arith.constant 0 : i32
    %c0_i32_0 = arith.constant 0 : i32
    return %arg0, %c0_i32 : i32, i32
  }
  func.func @transform_4(%arg0: i32, %arg1: i32) -> (i32, i32) {
    %c0_i32 = arith.constant 0 : i32
    %c0_i32_0 = arith.constant 0 : i32
    return %arg0, %c0_i32 : i32, i32
  }
}

</mosaic_0001>

<llo_original>
// kernel: mlp_forward.1
$region0: #{mlp_forward.1}
  #allocation0 [shape = 'u32[]', space=smem, size = 0x4, offset = 0x4, fixed_abs, tag = 'smem constant byte address 0x4 - core index']
  #allocation1 [shape = 'u32[144,128]{1,0:T(1,128)}', space=vmem, size = 0x12000, scoped, tag = 'internal scratch']
  %s0 = inlined_call_operand.hbm [shape: f32[8,128], index: 0, kind: input, shape index: {}]
  %s1 = inlined_call_operand.hbm [shape: bf16[5,128,128], index: 1, kind: input, shape index: {}]
  %s2 = inlined_call_operand.hbm [shape: f32[8,128], index: 2, kind: output, shape index: {0}]
  %s3 = inlined_call_operand.vmem [shape: f32[1,5], index: 3, kind: output, shape index: {1}]
  %s4 = inlined_call_operand.vmem [shape: f32[1,5], index: 4, kind: output, shape index: {2}]
  %5 = xla_tuple %s2, %s3, %s4
  %s6 = sld [smem:[#allocation0]]
  $region69: #{mlp_forward.1} parent=0
    _
  %s8 = ssub.s32 1, %s6
  %s9 = scalar_select 0, %s8, %s6
  $region1: #{mlp_forward.1} parent=0
    #allocation2 [shape = 'u8[4096]{0}', space=vmem, size = 0x1000, scoped, tag = 'input window, operand 0, single buffered']
    #allocation3 [shape = 's32[2]{0}', space=sflag, size = 0x8, scoped, tag = 'scoped memory for mlp_forward.1']
    #allocation4 [shape = 's32[2]{0}', space=sflag, size = 0x8, scoped, tag = 'scoped memory for mlp_forward.1']
    #allocation5 [shape = 's32[2]{0}', space=sflag, size = 0x8, scoped, tag = 'scoped memory for mlp_forward.1']
    #allocation6 [shape = 'u8[65536]{0}', space=vmem, size = 0x10000, scoped, tag = 'input window, operand 1']
    #allocation7 [shape = 's32[2]{0}', space=sflag, size = 0x8, scoped, tag = 'scoped memory for mlp_forward.1']
    #allocation8 [shape = 'u8[4096]{0}', space=vmem, size = 0x1000, scoped, tag = 'output window, operand 0, single buffered']
    #allocation9 [shape = 'u8[512]{0}', space=smem, size = 0x200, scoped, tag = 'output window, operand 1, single buffered']
    #allocation10 [shape = 'u8[512]{0}', space=smem, size = 0x200, scoped, tag = 'output window, operand 2, single buffered']
    #allocation11 [shape = 's32[1]{0}', space=sflag, size = 0x4, scoped, tag = 'scoped memory for mlp_forward.1']
    %10 = vsyncpa [#allocation3], 0
    %11 = vsyncpa [#allocation7], 0
    %s12 = scalar_lea.sflag [#allocation7], 1
    %13 = vsyncpa %s12, 0
    %14 = vsyncpa [#allocation4], 0
    %15 = vsyncpa [#allocation5], 0
    %16 = vsyncpa [#allocation11], 0
    loop: start=0, step=1, limit=7
    $region2: #{mlp_forward.1} parent=1 // loop_pre_header
      _
    $region3: #{mlp_forward.1} parent=1 // loop_header
      %s18 = sphi 0, %s22
      %p19 = scmp.ge.s32.totalorder %s18, 7
      %s25 = sphi 0, %s37
      %s26 = sphi 0, %s33
      %s27 = sphi 0, %s25
      %s28 = sphi 0, %s26
      %s29 = sphi 0, %s27
      %s30 = sphi 0, %s28
      %s40 = sphi 0, %s42
      %s43 = sphi 0, %s40
      %s44 = sphi 0, %s43
      %s60 = sphi 0, %s44
      %s66 = sphi 0, %s68
      %s69 = sphi 0, %s66
      %s70 = sphi 0, %s69
      %s86 = sphi 0, %s70
      %s92 = sphi 0, %s94
      %s95 = sphi 0, %s92
      %s96 = sphi 0, %s95
      %s112 = sphi 0, %s96
      %s118 = sphi 0, %s120
      %s121 = sphi 0, %s118
      %s122 = sphi 0, %s121
      %s138 = sphi 0, %s122
      %s144 = sphi 0, %s146
      %s147 = sphi 0, %s144
      %s148 = sphi 0, %s147
      %s164 = sphi 0, %s148
    $region4: #{mlp_forward.1} parent=1 // loop_header_branch
      %21 = sbr.rel (%p19) target = $region8
    $region5: #{mlp_forward.1} parent=1 // loop_body
      %s23 = ssub.s32 %s18, 1
      %s24 = ssub.s32 %s18, 2
      %s31 = sadd.s32 1, %s26
      %p32 = scmp.ge.s32.totalorder %s31, 5
      %s33 = scalar_select %p32, 0, %s31
      %s34 = sadd.s32 1, %s25
      %s35 = scalar_select %p32, %s34, %s25
      %p36 = scmp.ge.s32.totalorder %s35, 1
      %s37 = scalar_select %p36, 0, %s35
      %s38 = ssub.s32 %s25, %s37
      %p39 = scmp.eq.s32.totalorder %s38, 0
      %s41 = sadd.s32 %s40, 1
      %s42 = scalar_select %p39, %s40, %s41
      %p45 = pneg %p39
      %p46 = scmp.eq.s32.totalorder %s18, 4
      %p47 = por %p45, %p46
      %p48 = scmp.ne.s32.totalorder %s40, %s43
      %p49 = scmp.eq.s32.totalorder %s18, 0
      %p50 = por %p48, %p49
      %p51 = scmp.ne.s32.totalorder %s40, %s43
      %p52 = scmp.eq.s32.totalorder %s23, 4
      %p53 = por %p51, %p52
      %p54 = scmp.ne.s32.totalorder %s43, %s44
      %p55 = scmp.eq.s32.totalorder %s23, 0
      %p56 = por %p54, %p55
      %p57 = scmp.ne.s32.totalorder %s43, %s44
      %p58 = scmp.eq.s32.totalorder %s24, 4
      %p59 = por %p57, %p58
      %p61 = scmp.ne.s32.totalorder %s44, %s60
      %p62 = scmp.eq.s32.totalorder %s24, 0
      %p63 = por %p61, %p62
      %s64 = ssub.s32 %s26, %s33
      %p65 = scmp.eq.s32.totalorder %s64, 0
      %s67 = sadd.s32 %s66, 1
      %s68 = scalar_select %p65, %s66, %s67
      %p71 = pneg %p65
      %p72 = scmp.eq.s32.totalorder %s18, 4
      %p73 = por %p71, %p72
      %p74 = scmp.ne.s32.totalorder %s66, %s69
      %p75 = scmp.eq.s32.totalorder %s18, 0
      %p76 = por %p74, %p75
      %p77 = scmp.ne.s32.totalorder %s66, %s69
      %p78 = scmp.eq.s32.totalorder %s23, 4
      %p79 = por %p77, %p78
      %p80 = scmp.ne.s32.totalorder %s69, %s70
      %p81 = scmp.eq.s32.totalorder %s23, 0
      %p82 = por %p80, %p81
      %p83 = scmp.ne.s32.totalorder %s69, %s70
      %p84 = scmp.eq.s32.totalorder %s24, 4
      %p85 = por %p83, %p84
      %p87 = scmp.ne.s32.totalorder %s70, %s86
      %p88 = scmp.eq.s32.totalorder %s24, 0
      %p89 = por %p87, %p88
      %s90 = ssub.s32 %s25, %s37
      %p91 = scmp.eq.s32.totalorder %s90, 0
      %s93 = sadd.s32 %s92, 1
      %s94 = scalar_select %p91, %s92, %s93
      %p97 = pneg %p91
      %p98 = scmp.eq.s32.totalorder %s18, 4
      %p99 = por %p97, %p98
      %p100 = scmp.ne.s32.totalorder %s92, %s95
      %p101 = scmp.eq.s32.totalorder %s18, 0
      %p102 = por %p100, %p101
      %p103 = scmp.ne.s32.totalorder %s92, %s95
      %p104 = scmp.eq.s32.totalorder %s23, 4
      %p105 = por %p103, %p104
      %p106 = scmp.ne.s32.totalorder %s95, %s96
      %p107 = scmp.eq.s32.totalorder %s23, 0
      %p108 = por %p106, %p107
      %p109 = scmp.ne.s32.totalorder %s95, %s96
      %p110 = scmp.eq.s32.totalorder %s24, 4
      %p111 = por %p109, %p110
      %p113 = scmp.ne.s32.totalorder %s96, %s112
      %p114 = scmp.eq.s32.totalorder %s24, 0
      %p115 = por %p113, %p114
      %s116 = ssub.s32 %s25, %s37
      %p117 = scmp.eq.s32.totalorder %s116, 0
      %s119 = sadd.s32 %s118, 1
      %s120 = scalar_select %p117, %s118, %s119
      %p123 = pneg %p117
      %p124 = scmp.eq.s32.totalorder %s18, 4
      %p125 = por %p123, %p124
      %p126 = scmp.ne.s32.totalorder %s118, %s121
      %p127 = scmp.eq.s32.totalorder %s18, 0
      %p128 = por %p126, %p127
      %p129 = scmp.ne.s32.totalorder %s118, %s121
      %p130 = scmp.eq.s32.totalorder %s23, 4
      %p131 = por %p129, %p130
      %p132 = scmp.ne.s32.totalorder %s121, %s122
      %p133 = scmp.eq.s32.totalorder %s23, 0
      %p134 = por %p132, %p133
      %p135 = scmp.ne.s32.totalorder %s121, %s122
      %p136 = scmp.eq.s32.totalorder %s24, 4
      %p137 = por %p135, %p136
      %p139 = scmp.ne.s32.totalorder %s122, %s138
      %p140 = scmp.eq.s32.totalorder %s24, 0
      %p141 = por %p139, %p140
      %s142 = ssub.s32 %s25, %s37
      %p143 = scmp.eq.s32.totalorder %s142, 0
      %s145 = sadd.s32 %s144, 1
      %s146 = scalar_select %p143, %s144, %s145
      %p149 = pneg %p143
      %p150 = scmp.eq.s32.totalorder %s18, 4
      %p151 = por %p149, %p150
      %p152 = scmp.ne.s32.totalorder %s144, %s147
      %p153 = scmp.eq.s32.totalorder %s18, 0
      %p154 = por %p152, %p153
      %p155 = scmp.ne.s32.totalorder %s144, %s147
      %p156 = scmp.eq.s32.totalorder %s23, 4
      %p157 = por %p155, %p156
      %p158 = scmp.ne.s32.totalorder %s147, %s148
      %p159 = scmp.eq.s32.totalorder %s23, 0
      %p160 = por %p158, %p159
      %p161 = scmp.ne.s32.totalorder %s147, %s148
      %p162 = scmp.eq.s32.totalorder %s24, 4
      %p163 = por %p161, %p162
      %p165 = scmp.ne.s32.totalorder %s148, %s164
      %p166 = scmp.eq.s32.totalorder %s24, 0
      %p167 = por %p165, %p166
      %p168 = scmp.le.s32.totalorder 1, %s18
      %p169 = scmp.lt.s32.totalorder %s18, 6
      %p170 = pnand %p168, %p169
      %p171 = pneg %p170
      // Predicated region
      $region9: #{mlp_forward.1} parent=5 // pred_check
        _
      $region10: #{mlp_forward.1} parent=5 // pred_check_branch
        %173 = sbr.rel (%p170) target = $region12
      $region11: #{mlp_forward.1} parent=5 // pred_region
        %s174 = ssub.s32 %s18, 1
        // Predicated region
        $region13: #{mlp_forward.1} parent=11 // pred_check
          %p175 = pneg %p56
        $region14: #{mlp_forward.1} parent=11 // pred_check_branch
          %177 = sbr.rel (%p175) target = $region16
        $region15: #{mlp_forward.1} parent=11 // pred_region
          %s179 = ssub.s32 128, 128
          %180 = vsyncadd [#allocation3], %s179
          %s181 = smul.addr %s27, 128
          %s182 = scalar_lea.hbm %s0, %s181
          %s184 = sshll.u32 [#allocation2], 4
          %s185 = int_to_ptr.vmem [resolvable:$true] %s184
          %187 = dma.hbm_to_vmem [thread:$0]  %s182, 128, %s185, [#allocation3]
        $region16: #{mlp_forward.1} parent=11 // pred_fallthru
          _
      $region12: #{mlp_forward.1} parent=5 // pred_fallthru
        _
      %p188 = scmp.lt.s32.totalorder %s18, 5
      // Predicated region
      $region17: #{mlp_forward.1} parent=5 // pred_check
        %p189 = pneg %p188
      $region18: #{mlp_forward.1} parent=5 // pred_check_branch
        %191 = sbr.rel (%p189) target = $region20
      $region19: #{mlp_forward.1} parent=5 // pred_region
        // Predicated region
        $region21: #{mlp_forward.1} parent=19 // pred_check
          %p192 = pneg %p76
        $region22: #{mlp_forward.1} parent=19 // pred_check_branch
          %194 = sbr.rel (%p192) target = $region24
        $region23: #{mlp_forward.1} parent=19 // pred_region
          %s195 = sand.u32 %s66, 1
          %s196 = scalar_lea.sflag [#allocation7], %s195
          %s197 = sand.u32 %s66, 1
          %s198 = smul.addr %s197, 64
          %s199 = scalar_lea.vmem [#allocation6], %s198
          %s201 = ssub.s32 1024, 1024
          %202 = vsyncadd %s196, %s201
          %s203 = smul.addr %s26, 16
          %s204 = smul.addr %s203, 64
          %s205 = scalar_lea.hbm %s1, %s204
          %s206 = sshll.u32 %s199, 4
          %s207 = int_to_ptr.vmem [resolvable:$true] %s206
          %212 = dma.hbm_to_vmem [thread:$0]  %s205, 1024, %s207, %s196, 64, 64, 4
        $region24: #{mlp_forward.1} parent=19 // pred_fallthru
          _
      $region20: #{mlp_forward.1} parent=5 // pred_fallthru
        _
      %p213 = scmp.le.s32.totalorder 1, %s18
      %p214 = scmp.lt.s32.totalorder %s18, 6
      %p215 = pnand %p213, %p214
      %p216 = pneg %p215
      // Predicated region
      $region25: #{mlp_forward.1} parent=5 // pred_check
        _
      $region26: #{mlp_forward.1} parent=5 // pred_check_branch
        %218 = sbr.rel (%p215) target = $region28
      $region27: #{mlp_forward.1} parent=5 // pred_region
        %s219 = ssub.s32 %s18, 1
        // Predicated region
        $region29: #{mlp_forward.1} parent=27 // pred_check
          %p220 = pneg %p56
        $region30: #{mlp_forward.1} parent=27 // pred_check_branch
          %222 = sbr.rel (%p220) target = $region32
        $region31: #{mlp_forward.1} parent=27 // pred_region
          %223 = dma.done [#allocation3], 128
        $region32: #{mlp_forward.1} parent=27 // pred_fallthru
          _
        %s224 = sand.u32 %s69, 1
        %s225 = scalar_lea.sflag [#allocation7], %s224
        %s226 = sand.u32 %s69, 1
        %s227 = smul.addr %s226, 64
        %s228 = scalar_lea.vmem [#allocation6], %s227
        // Predicated region
        $region33: #{mlp_forward.1} parent=27 // pred_check
          %p229 = pneg %p82
        $region34: #{mlp_forward.1} parent=27 // pred_check_branch
          %231 = sbr.rel (%p229) target = $region36
        $region35: #{mlp_forward.1} parent=27 // pred_region
          %232 = dma.done %s225, 1024
        $region36: #{mlp_forward.1} parent=27 // pred_fallthru
          _
        %p233 = pneg %p56
        %p234 = pneg %p53
        %s235 = sand.u32 %s69, 1
        %s236 = scalar_lea.sflag [#allocation7], %s235
        %s237 = sand.u32 %s69, 1
        %s238 = smul.addr %s237, 64
        %s239 = scalar_lea.vmem [#allocation6], %s238
        %p240 = pneg %p82
        %p241 = pneg %p79
        %p242 = pneg %p108
        %p243 = pneg %p105
        %p244 = pneg %p134
        %p245 = pneg %p131
        %p246 = pneg %p160
        %p247 = pneg %p157
        %p249 = scmp.eq.s32.totalorder %s28, 0
        // Predicated region
        $region37: #{mlp_forward.1} parent=27 // pred_check
          %p250 = pneg %p249
        $region38: #{mlp_forward.1} parent=27 // pred_check_branch
          %252 = sbr.rel (%p250) target = $region40
        $region39: #{mlp_forward.1} parent=27 // pred_region
          %v253 = vld [vmem:[#allocation2] sm:$0xff]
          %254 = vst [vmem:[#allocation8] sm:$0xff] %v253
        $region40: #{mlp_forward.1} parent=27 // pred_fallthru
          _
        %v255 = vld [vmem:[#allocation8] sm:$0xff]
        %v256 = vpack.c.bf16 %v255, %v255
        %v257 = vld [vmem:[%s228] sm:$0xf]
        %v258 = vld [vmem:[%s228 + $0x4] sm:$0xf]
        %v259 = vld [vmem:[%s228 + $0x8] sm:$0xf]
        %v260 = vld [vmem:[%s228 + $0xc] sm:$0xf]
        %v261 = vld [vmem:[%s228 + $0x10] sm:$0xf]
        %v262 = vld [vmem:[%s228 + $0x14] sm:$0xf]
        %v263 = vld [vmem:[%s228 + $0x18] sm:$0xf]
        %v264 = vld [vmem:[%s228 + $0x1c] sm:$0xf]
        %v265 = vld [vmem:[%s228 + $0x20] sm:$0xf]
        %v266 = vld [vmem:[%s228 + $0x24] sm:$0xf]
        %v267 = vld [vmem:[%s228 + $0x28] sm:$0xf]
        %v268 = vld [vmem:[%s228 + $0x2c] sm:$0xf]
        %v269 = vld [vmem:[%s228 + $0x30] sm:$0xf]
        %v270 = vld [vmem:[%s228 + $0x34] sm:$0xf]
        %v271 = vld [vmem:[%s228 + $0x38] sm:$0xf]
        %v272 = vld [vmem:[%s228 + $0x3c] sm:$0xf]
        %v289 = vunpack.c.l.b16 %v257
        %v290 = vunpack.c.l.b16 %v258
        %v291 = vunpack.c.l.b16 %v259
        %v292 = vunpack.c.l.b16 %v260
        %v293 = vunpack.c.l.b16 %v261
        %v294 = vunpack.c.l.b16 %v262
        %v295 = vunpack.c.l.b16 %v263
        %v296 = vunpack.c.l.b16 %v264
        %v297 = vunpack.c.l.b16 %v265
        %v298 = vunpack.c.l.b16 %v266
        %v299 = vunpack.c.l.b16 %v267
        %v300 = vunpack.c.l.b16 %v268
        %v301 = vunpack.c.l.b16 %v269
        %v302 = vunpack.c.l.b16 %v270
        %v303 = vunpack.c.l.b16 %v271
        %v304 = vunpack.c.l.b16 %v272
        %v305 = vpack.c.b16 %v290, %v289
        %v306 = vpack.c.b16 %v292, %v291
        %v307 = vpack.c.b16 %v294, %v293
        %v308 = vpack.c.b16 %v296, %v295
        %v309 = vpack.c.b16 %v298, %v297
        %v310 = vpack.c.b16 %v300, %v299
        %v311 = vpack.c.b16 %v302, %v301
        %v312 = vpack.c.b16 %v304, %v303
        %321 = vmatprep.subr.bf16.mxu0 0
        %322 = vmatpush1.bf16.msra.mxu0 %v305
        %323 = vmatprep.subr.bf16.mxu0 0
        %324 = vmatpush1.bf16.msra.mxu0 %v306
        %325 = vmatprep.subr.bf16.mxu0 0
        %326 = vmatpush1.bf16.msra.mxu0 %v307
        %327 = vmatprep.subr.bf16.mxu0 0
        %328 = vmatpush1.bf16.msra.mxu0 %v308
        %329 = vmatprep.subr.bf16.mxu0 0
        %330 = vmatpush1.bf16.msra.mxu0 %v309
        %331 = vmatprep.subr.bf16.mxu0 0
        %332 = vmatpush1.bf16.msra.mxu0 %v310
        %333 = vmatprep.subr.bf16.mxu0 0
        %334 = vmatpush1.bf16.msra.mxu0 %v311
        %335 = vmatprep.subr.bf16.mxu0 0
        %336 = vmatpush1.bf16.msra.mxu0 %v312
        %337 = vmatprep.subr.bf16.mxu0 0
        %338 = vmatpush1.bf16.msra.mxu0 0
        %339 = vmatprep.subr.bf16.mxu0 0
        %340 = vmatpush1.bf16.msra.mxu0 0
        %341 = vmatprep.subr.bf16.mxu0 0
        %342 = vmatpush1.bf16.msra.mxu0 0
        %343 = vmatprep.subr.bf16.mxu0 0
        %344 = vmatpush1.bf16.msra.mxu0 0
        %345 = vmatprep.subr.bf16.mxu0 0
        %346 = vmatpush1.bf16.msra.mxu0 0
        %347 = vmatprep.subr.bf16.mxu0 0
        %348 = vmatpush1.bf16.msra.mxu0 0
        %349 = vmatprep.subr.bf16.mxu0 0
        %350 = vmatpush1.bf16.msra.mxu0 0
        %351 = vmatprep.subr.bf16.mxu0 0
        %352 = vmatpush1.bf16.msra.mxu0 0
        %353 = vmatprep.mubr.bf16.mxu0 0
        %354 = vmatmul.mubr.bf16.gmra.mrb[0].mxu0 %v256
        %v355 = vpop.f32.mrb[0].mxu0
        %v356 = vadd.f32 0.0, %v355
        %v357 = vpop.f32.mrb[0].mxu0
        %v358 = vpop.f32.mrb[0].mxu0
        %v359 = vpop.f32.mrb[0].mxu0
        %360 = vdwg.mxu0
        %v361 = vmax.f32 %v356, 0.0
        %362 = vst [vmem:[#allocation8] sm:$0xff] %v361
        %363 = vadd.xlane.f32.xlu0 %v361
        %v364 = vpop.xlane.xlu0 %363
        %v365 = vrot.slane %v364, 4
        %v366 = vadd.f32 %v364, %v365
        %v367 = vrot.slane %v366, 2
        %v368 = vadd.f32 %v366, %v367
        %v369 = vrot.slane %v368, 1
        %v370 = vadd.f32 %v368, %v369
        %s371 = vtos %v370
        %s372 = scalar_lea.smem [#allocation9], %s28
        %373 = sst [smem:[%s372]] %s371
        %v374 = vmul.f32 %v361, %v361
        %375 = vadd.xlane.f32.xlu0 %v374
        %v376 = vpop.xlane.xlu0 %375
        %v377 = vrot.slane %v376, 4
        %v378 = vadd.f32 %v376, %v377
        %v379 = vrot.slane %v378, 2
        %v380 = vadd.f32 %v378, %v379
        %v381 = vrot.slane %v380, 1
        %v382 = vadd.f32 %v380, %v381
        %s383 = vtos %v382
        %s384 = scalar_lea.smem [#allocation10], %s28
        %385 = sst [smem:[%s384]] %s383
        // Predicated region
        $region41: #{mlp_forward.1} parent=27 // pred_check
          %p386 = pneg %p105
        $region42: #{mlp_forward.1} parent=27 // pred_check_branch
          %388 = sbr.rel (%p386) target = $region44
        $region43: #{mlp_forward.1} parent=27 // pred_region
          %s390 = ssub.s32 128, 128
          %391 = vsyncadd [#allocation4], %s390
          %s392 = smul.addr %s27, 128
          %s393 = scalar_lea.hbm %s2, %s392
          %s395 = sshll.u32 [#allocation8], 4
          %s396 = int_to_ptr.vmem [resolvable:$true] %s395
          %398 = dma.vmem_to_hbm [thread:$0]  %s396, 128, %s393, [#allocation4]
        $region44: #{mlp_forward.1} parent=27 // pred_fallthru
          _
        // Predicated region
        $region45: #{mlp_forward.1} parent=27 // pred_check
          %p399 = pneg %p131
        $region46: #{mlp_forward.1} parent=27 // pred_check_branch
          %401 = sbr.rel (%p399) target = $region48
        $region47: #{mlp_forward.1} parent=27 // pred_region
          %s403 = ssub.s32 16, 16
          %404 = vsyncadd [#allocation5], %s403
          %s405 = scalar_lea.vmem %s3, %s27
          %s407 = sshll.u32 %s405, 4
          %s408 = int_to_ptr.vmem [resolvable:$true] %s407
          %410 = dma.smem_to_vmem [#allocation9], 16, %s408, [#allocation5]
        $region48: #{mlp_forward.1} parent=27 // pred_fallthru
          _
        // Predicated region
        $region49: #{mlp_forward.1} parent=27 // pred_check
          %p411 = pneg %p157
        $region50: #{mlp_forward.1} parent=27 // pred_check_branch
          %413 = sbr.rel (%p411) target = $region52
        $region51: #{mlp_forward.1} parent=27 // pred_region
          %s415 = ssub.s32 16, 16
          %416 = vsyncadd [#allocation11], %s415
          %s417 = scalar_lea.vmem %s4, %s27
          %s419 = sshll.u32 %s417, 4
          %s420 = int_to_ptr.vmem [resolvable:$true] %s419
          %422 = dma.smem_to_vmem [#allocation10], 16, %s420, [#allocation11]
        $region52: #{mlp_forward.1} parent=27 // pred_fallthru
          _
        // Predicated region
        $region53: #{mlp_forward.1} parent=27 // pred_check
          %p423 = pneg %p105
        $region54: #{mlp_forward.1} parent=27 // pred_check_branch
          %425 = sbr.rel (%p423) target = $region56
        $region55: #{mlp_forward.1} parent=27 // pred_region
          %426 = dma.done [#allocation4], 128
        $region56: #{mlp_forward.1} parent=27 // pred_fallthru
          _
        // Predicated region
        $region57: #{mlp_forward.1} parent=27 // pred_check
          %p427 = pneg %p131
        $region58: #{mlp_forward.1} parent=27 // pred_check_branch
          %429 = sbr.rel (%p427) target = $region60
        $region59: #{mlp_forward.1} parent=27 // pred_region
          %430 = dma.done [#allocation5], 16
        $region60: #{mlp_forward.1} parent=27 // pred_fallthru
          _
        // Predicated region
        $region61: #{mlp_forward.1} parent=27 // pred_check
          %p431 = pneg %p157
        $region62: #{mlp_forward.1} parent=27 // pred_check_branch
          %433 = sbr.rel (%p431) target = $region64
        $region63: #{mlp_forward.1} parent=27 // pred_region
          %434 = dma.done [#allocation11], 16
        $region64: #{mlp_forward.1} parent=27 // pred_fallthru
          _
        %435 = sfence
      $region28: #{mlp_forward.1} parent=5 // pred_fallthru
        _
      %p436 = scmp.le.s32.totalorder 2, %s18
      // Predicated region
      $region65: #{mlp_forward.1} parent=5 // pred_check
        %p437 = pneg %p436
      $region66: #{mlp_forward.1} parent=5 // pred_check_branch
        %439 = sbr.rel (%p437) target = $region68
      $region67: #{mlp_forward.1} parent=5 // pred_region
        %s440 = ssub.s32 %s18, 2
      $region68: #{mlp_forward.1} parent=5 // pred_fallthru
        _
    $region6: #{mlp_forward.1} parent=1 // loop_footer
      %s22 = sadd.s32 1, %s18
    $region7: #{mlp_forward.1} parent=1 // loop_footer_branch
      %17 = sbr.rel target = $region3
    $region8: #{mlp_forward.1} parent=1 // loop_exit
      _
    %441 = vsyncpa [#allocation3], 1
    %s442 = scalar_lea.sflag [#allocation3], 1
    %443 = vsyncpa %s442, 1
    %444 = vsyncpa [#allocation7], 1
    %s445 = scalar_lea.sflag [#allocation7], 1
    %446 = vsyncpa %s445, 1
    %447 = vsyncpa [#allocation4], 1
    %s448 = scalar_lea.sflag [#allocation4], 1
    %449 = vsyncpa %s448, 1
    %450 = vsyncpa [#allocation5], 1
    %s451 = scalar_lea.sflag [#allocation5], 1
    %452 = vsyncpa %s451, 1
    %453 = vsyncpa [#allocation11], 1

</llo_original>
